<compile_context>
chip_gen: v6e
topology: v6e:2x2x1
jax: 0.10.0
libtpu: 0.0.40
codegen_flags: <defaults>
</compile_context>

<pallas_src>
import numpy as np
import jax
import jax.numpy as jnp
from jax import lax
from jax.experimental import pallas as pl
from jax.experimental.pallas import tpu as pltpu

SPACE_CODE = 32      # ' '
PAD_CODE = 0         # padding
SEP_MAX_CODE = 32    # any code <= 32 (pad / control / whitespace) is a separator

_MAX_TILE_ROWS = 2048


def _tok_dtype(L: int):
    # max tokens per row = ceil(L / 2)
    if L <= 254:
        return jnp.int8
    if L <= 65534:
        return jnp.int16
    return jnp.int32


def _row_tile(B: int) -> int:
    # Per-block I/O at 2048 rows is ~0.75 MiB (u8 in + i8 tok_id + i8 n_tok),
    # ~1.5 MiB double-buffered, plus ~6-8 MiB of in-kernel int32/f32
    # temporaries: safely under every generation's scoped-VMEM default.
    # bb == B only for small batches (<= 2048 rows); any larger batch gets a
    # cdiv grid with >= 2 steps (v7x 2-TC sharding via "parallel").
    return B if B <= _MAX_TILE_ROWS else _MAX_TILE_ROWS


def _tokenize_kernel(codes_ref, tok_id_ref, n_tok_ref):
    # codes_ref : (bb, L)   uint8  character codes (0 = pad, 32 = space)
    # tok_id_ref: (bb, L)   narrow int, per-character token index (-1 sep/pad)
    # n_tok_ref : (bb, 128) narrow int, token count broadcast across lanes
    codes = codes_ref[...].astype(jnp.int32)
    bb, L = codes.shape
    pos = lax.broadcasted_iota(jnp.int32, (bb, L), 1)

    # whitespace-tokenizer separator: pad(0), control chars, space(32)
    is_sep = codes <= SEP_MAX_CODE
    sep_i = is_sep.astype(jnp.int32)

    # previous-char separator flag: lane rotate by 1 (XLU), mask the wraparound
    prev_sep = pltpu.roll(sep_i, shift=1, axis=1)
    prev_sep = jnp.where(pos == 0, 1, prev_sep)
    # a token starts at a non-separator character preceded by a separator
    token_start = jnp.where(is_sep, 0, prev_sep)          # {0, 1} int32

    if L <= 512:
        # MXU inclusive prefix sum along lanes: in-kernel (L, L) lower-tri
        # bf16 matrix (no HBM operand).  Counts <= L/2 are exact in bf16->f32.
        row = lax.broadcasted_iota(jnp.int32, (L, L), 0)
        col = lax.broadcasted_iota(jnp.int32, (L, L), 1)
        tri = jnp.where(row <= col, 1.0, 0.0).astype(jnp.bfloat16)
        lhs = token_start.astype(jnp.float32).astype(jnp.bfloat16)
        cums = jnp.dot(lhs, tri,
                       preferred_element_type=jnp.float32).astype(jnp.int32)
    else:
        # Fallback for long rows: Hillis-Steele shift-and-add lane scan
        # (log2(L) XLU rolls + masked VPU adds).
        cums = token_start
        shift = 1
        while shift < L:
            rolled = pltpu.roll(cums, shift=shift, axis=1)
            cums = cums + jnp.where(pos >= shift, rolled, 0)
            shift *= 2

    tok_id_ref[...] = jnp.where(is_sep, -1, cums - 1).astype(tok_id_ref.dtype)
    # lane-dense token-count output: total (last column) broadcast over 128 lanes
    n_tok_ref[...] = jnp.broadcast_to(
        cums[:, L - 1:L], n_tok_ref.shape).astype(n_tok_ref.dtype)


@jax.jit
def tokenize_ids(codes: jax.Array) -> tuple[jax.Array, jax.Array]:
    """codes: (B, L) uint8 char codes -> (token_ids (B,L) narrow int, n_tokens (B,1) int32)."""
    codes = codes.astype(jnp.uint8)
    B, L = codes.shape
    bb = _row_tile(B)
    grid = (pl.cdiv(B, bb),)
    tdt = _tok_dtype(L)

    tok_id, n_tok_lanes = pl.pallas_call(
        _tokenize_kernel,
        out_shape=(
            jax.ShapeDtypeStruct((B, L), tdt),
            jax.ShapeDtypeStruct((B, 128), tdt),   # count width decoupled from L
        ),
        grid=grid,
        in_specs=[pl.BlockSpec((bb, L), lambda i: (i, 0))],
        out_specs=(
            pl.BlockSpec((bb, L), lambda i: (i, 0)),
            pl.BlockSpec((bb, 128), lambda i: (i, 0)),
        ),
        compiler_params=pltpu.CompilerParams(
            dimension_semantics=("parallel",)),
    )(codes)
    return tok_id, n_tok_lanes[:, :1].astype(jnp.int32)


def tokenizer_module_forward(text: str, L: int = 128) -> list[str]:
    """Glue: string -> codes -> Pallas kernel -> list[str] (whitespace tokens)."""
    # TODO(synk): full torchtext basic_english punctuation normalization is host-side.
    text = text.lower()
    raw = [ord(c) if ord(c) < 256 else ord("?") for c in text[:L]]
    codes_np = np.zeros((1, L), dtype=np.uint8)
    codes_np[0, : len(raw)] = raw
    tok_id, n_tok = tokenize_ids(jnp.asarray(codes_np))
    tok_id = np.asarray(jax.block_until_ready(tok_id))[0]
    n = int(np.asarray(n_tok)[0, 0])
    tokens = []
    for t in range(n):
        idxs = np.nonzero(tok_id == t)[0]
        tokens.append("".join(chr(codes_np[0, i]) for i in idxs))
    return tokens


if __name__ == "__main__":
    B, L = 8, 128

    # Deterministic synthetic batch of "strings": random lowercase letters and
    # spaces generated from PRNGKey(0); draw 0 -> space, 1..26 -> 'a'..'z'.
    key = jax.random.PRNGKey(0)
    draws = jax.random.randint(key, (B, L), 0, 27)
    codes = jnp.where(draws == 0, SPACE_CODE, draws + ord("a") - 1)
    # pad the tail of each row so sequences have some trailing padding
    pos = jnp.arange(L)[None, :]
    codes = jnp.where(pos >= L - 8, PAD_CODE, codes).astype(jnp.uint8)

    tok_id, n_tok = jax.block_until_ready(tokenize_ids(codes))

    # Reference check against Python str.split() (whitespace-tokenizer semantics).
    codes_np = np.asarray(codes)
    tok_id_np = np.asarray(tok_id)
    n_tok_np = np.asarray(n_tok)
    for b in range(B):
        s = "".join(chr(c) for c in codes_np[b] if c != PAD_CODE)
        ref_tokens = s.split()
        got_n = int(n_tok_np[b, 0])
        assert got_n == len(ref_tokens), (got_n, len(ref_tokens))
        for t in range(got_n):
            idxs = np.nonzero(tok_id_np[b] == t)[0]
            tok = "".join(chr(codes_np[b, i]) for i in idxs)
            assert tok == ref_tokens[t], (tok, ref_tokens[t])

    # Also exercise the string-in / list[str]-out wrapper once.
    toks = tokenizer_module_forward("The quick brown Fox jumps over the lazy dog")
    assert toks == ["the", "quick", "brown", "fox", "jumps", "over", "the", "lazy", "dog"]

    print("KERNEL_OK")
</pallas_src>

<mosaic_0001>
module attributes {stable_mosaic.version = 11 : i64} {
  func.func @_tokenize_kernel(%arg0: i32, %arg1: memref<8x128xi8, #tpu.memory_space<vmem>>, %arg2: memref<8x128xi8, #tpu.memory_space<vmem>>, %arg3: memref<8x128xi8, #tpu.memory_space<vmem>>) attributes {dimension_semantics = [#tpu.dimension_semantics<parallel>], iteration_bounds = array<i64: 1>, scalar_prefetch = 0 : i64, scratch_operands = 0 : i64, tpu.core_type = #tpu.core_type<tc>, window_params = [{transform_indices = @transform_0, window_bounds = array<i64: 8, 128>}, {transform_indices = @transform_1, window_bounds = array<i64: 8, 128>}, {transform_indices = @transform_2, window_bounds = array<i64: 8, 128>}]} {
    %c0 = arith.constant 0 : index
    %c0_0 = arith.constant 0 : index
    %0 = vector.load %arg1[%c0, %c0_0] : memref<8x128xi8, #tpu.memory_space<vmem>>, vector<8x128xi8>
    %1 = arith.extui %0 : vector<8x128xi8> to vector<8x128xi32>
    %2 = tpu.iota {dimensions = array<i32: 1>} : vector<8x128xi32>
    %c32_i32 = arith.constant 32 : i32
    %3 = vector.broadcast %c32_i32 : i32 to vector<8x128xi32>
    %4 = arith.cmpi sle, %1, %3 : vector<8x128xi32>
    %5 = arith.extui %4 : vector<8x128xi1> to vector<8x128xi32>
    %c1_i32 = arith.constant 1 : i32
    %6 = tpu.dynamic_rotate %5 by %c1_i32 dim 1 : vector<8x128xi32>, i32 -> vector<8x128xi32>
    %c0_i32 = arith.constant 0 : i32
    %7 = vector.broadcast %c0_i32 : i32 to vector<8x128xi32>
    %8 = arith.cmpi eq, %2, %7 : vector<8x128xi32>
    %c1_i32_1 = arith.constant 1 : i32
    %9 = vector.broadcast %c1_i32_1 : i32 to vector<8x128xi32>
    %10 = arith.select %8, %9, %6 : vector<8x128xi1>, vector<8x128xi32>
    %c0_i32_2 = arith.constant 0 : i32
    %11 = vector.broadcast %c0_i32_2 : i32 to vector<8x128xi32>
    %12 = arith.select %4, %11, %10 : vector<8x128xi1>, vector<8x128xi32>
    %13 = tpu.iota {dimensions = array<i32: 0>} : vector<128x128xi32>
    %14 = tpu.iota {dimensions = array<i32: 1>} : vector<128x128xi32>
    %15 = arith.cmpi sle, %13, %14 : vector<128x128xi32>
    %cst = arith.constant 1.000000e+00 : f32
    %cst_3 = arith.constant 0.000000e+00 : f32
    %16 = vector.broadcast %cst : f32 to vector<128x128xf32>
    %17 = vector.broadcast %cst_3 : f32 to vector<128x128xf32>
    %18 = arith.select %15, %16, %17 : vector<128x128xi1>, vector<128x128xf32>
    %19 = arith.truncf %18 : vector<128x128xf32> to vector<128x128xbf16>
    %20 = arith.sitofp %12 : vector<8x128xi32> to vector<8x128xf32>
    %21 = arith.truncf %20 : vector<8x128xf32> to vector<8x128xbf16>
    %cst_4 = arith.constant dense<0.000000e+00> : vector<8x128xf32>
    %22 = tpu.matmul %21, %19, %cst_4 {dimension_numbers = #tpu.dot_dimension_numbers<[1], [0], [0], [1], [0, 0, 1, 1], [], []>} : vector<8x128xbf16>, vector<128x128xbf16>, vector<8x128xf32> -> vector<8x128xf32>
    %23 = arith.fptosi %22 : vector<8x128xf32> to vector<8x128xi32>
    %c1_i32_5 = arith.constant 1 : i32
    %24 = vector.broadcast %c1_i32_5 : i32 to vector<8x128xi32>
    %25 = arith.subi %23, %24 : vector<8x128xi32>
    %c-1_i32 = arith.constant -1 : i32
    %26 = vector.broadcast %c-1_i32 : i32 to vector<8x128xi32>
    %27 = arith.select %4, %26, %25 : vector<8x128xi1>, vector<8x128xi32>
    %28 = arith.trunci %27 : vector<8x128xi32> to vector<8x128xi8>
    %c0_6 = arith.constant 0 : index
    %c0_7 = arith.constant 0 : index
    %29 = vector.load %arg2[%c0_6, %c0_7] : memref<8x128xi8, #tpu.memory_space<vmem>>, vector<8x128xi8>
    tpu.vector_store %arg2[%c0_6, %c0_7], %28 {strides = array<i32>} : memref<8x128xi8, #tpu.memory_space<vmem>>, vector<8x128xi8>,
    %30 = vector.extract_strided_slice %23 {offsets = [0, 127], sizes = [8, 1], strides = [1, 1]} : vector<8x128xi32> to vector<8x1xi32>
    %31 = vector.shape_cast %30 : vector<8x1xi32> to vector<8x1xi32>
    %32 = vector.broadcast %31 : vector<8x1xi32> to vector<8x128xi32>
    %33 = arith.trunci %32 : vector<8x128xi32> to vector<8x128xi8>
    %c0_8 = arith.constant 0 : index
    %c0_9 = arith.constant 0 : index
    %34 = vector.load %arg3[%c0_8, %c0_9] : memref<8x128xi8, #tpu.memory_space<vmem>>, vector<8x128xi8>
    tpu.vector_store %arg3[%c0_8, %c0_9], %33 {strides = array<i32>} : memref<8x128xi8, #tpu.memory_space<vmem>>, vector<8x128xi8>,
    return
  }
  func.func @transform_0(%arg0: i32) -> (i32, i32) {
    %c0_i32 = arith.constant 0 : i32
    %c0_i32_0 = arith.constant 0 : i32
    return %arg0, %c0_i32 : i32, i32
  }
  func.func @transform_1(%arg0: i32) -> (i32, i32) {
    %c0_i32 = arith.constant 0 : i32
    %c0_i32_0 = arith.constant 0 : i32
    return %arg0, %c0_i32 : i32, i32
  }
  func.func @transform_2(%arg0: i32) -> (i32, i32) {
    %c0_i32 = arith.constant 0 : i32
    %c0_i32_0 = arith.constant 0 : i32
    return %arg0, %c0_i32 : i32, i32
  }
}

</mosaic_0001>

<llo_original>
// kernel: tokenize_ids.1
$region0: #{tokenize_ids.1}
  #allocation0 [shape = 'u32[]', space=smem, size = 0x4, offset = 0x4, fixed_abs, tag = 'smem constant byte address 0x4 - core index']
  #allocation1 [shape = 'u32[144,128]{1,0:T(1,128)}', space=vmem, size = 0x12000, scoped, tag = 'internal scratch']
  %s0 = inlined_call_operand.hbm [shape: u8[8,128], index: 0, kind: input, shape index: {}]
  %s1 = inlined_call_operand.hbm [shape: s8[8,128], index: 1, kind: output, shape index: {0}]
  %s2 = inlined_call_operand.vmem [shape: s8[8,128], index: 2, kind: output, shape index: {1}]
  %3 = xla_tuple %s1, %s2
  %s4 = sld [smem:[#allocation0]]
  $region26: #{tokenize_ids.1} parent=0
    _
  %s6 = ssub.s32 1, %s4
  %s7 = scalar_select 0, %s6, %s4
  $region1: #{tokenize_ids.1} parent=0
    #allocation2 [shape = 'u8[1024]{0}', space=vmem, size = 0x400, scoped, tag = 'input window, operand 0, single buffered']
    #allocation3 [shape = 's32[1]{0}', space=sflag, size = 0x4, scoped, tag = 'scoped memory for tokenize_ids.1']
    #allocation4 [shape = 's32[1]{0}', space=sflag, size = 0x4, scoped, tag = 'scoped memory for tokenize_ids.1']
    #allocation5 [shape = 'u8[1024]{0}', space=vmem, size = 0x400, scoped, tag = 'output window, operand 0, single buffered']
    %8 = vsyncpa [#allocation3], 0
    %9 = vsyncpa [#allocation4], 0
    // Predicated region
    $region2: #{tokenize_ids.1} parent=1 // pred_check
      _
    $region3: #{tokenize_ids.1} parent=1 // pred_check_branch
      %11 = sbr.rel (0) target = $region5
    $region4: #{tokenize_ids.1} parent=1 // pred_region
      %s13 = ssub.s32 32, 32
      %14 = vsyncadd [#allocation3], %s13
      %s16 = sshll.u32 [#allocation2], 4
      %s17 = int_to_ptr.vmem [resolvable:$true] %s16
      %19 = dma.hbm_to_vmem [thread:$0]  %s0, 32, %s17, [#allocation3]
    $region5: #{tokenize_ids.1} parent=1 // pred_fallthru
      _
    // Predicated region
    $region6: #{tokenize_ids.1} parent=1 // pred_check
      _
    $region7: #{tokenize_ids.1} parent=1 // pred_check_branch
      %21 = sbr.rel (0) target = $region9
    $region8: #{tokenize_ids.1} parent=1 // pred_region
      %22 = dma.done [#allocation3], 32
    $region9: #{tokenize_ids.1} parent=1 // pred_fallthru
      _
    %v24 = vld [vmem:[#allocation2] sm:$0x3]
    %v25 = vunpack.c.0.s8 %v24
    %v26 = vand.u32 %v25, 255
    %v27 = vlaneseq
    %v28 = vand.u32 %v27, 127
    %vm29 = vcmp.le.s32.totalorder %v26, 32
    %v30 = vsel %vm29, 1, 0
    %31 = vrot.lane.b32.xlu0 %v30, 1
    %v32 = vpop.permute.xlu0 %31
    %vm33 = vcmp.eq.s32.totalorder %v28, 0
    %v34 = vsel %vm33, 1, %v32
    %v35 = vsel %vm29, 0, %v34
    %v36 = vlaneseq
    %v37 = vshrl.u32 %v36, 7
    %v38 = vadd.s32 %v37, 8
    %v39 = vadd.s32 %v37, 16
    %v40 = vadd.s32 %v37, 24
    %v41 = vadd.s32 %v37, 32
    %v42 = vadd.s32 %v37, 40
    %v43 = vadd.s32 %v37, 48
    %v44 = vadd.s32 %v37, 56
    %v45 = vadd.s32 %v37, 64
    %v46 = vadd.s32 %v37, 72
    %v47 = vadd.s32 %v37, 80
    %v48 = vadd.s32 %v37, 88
    %v49 = vadd.s32 %v37, 96
    %v50 = vadd.s32 %v37, 104
    %v51 = vadd.s32 %v37, 112
    %v52 = vadd.s32 %v37, 120
    %vm53 = vcmp.le.s32.totalorder %v37, %v28
    %vm54 = vcmp.le.s32.totalorder %v38, %v28
    %vm55 = vcmp.le.s32.totalorder %v39, %v28
    %vm56 = vcmp.le.s32.totalorder %v40, %v28
    %vm57 = vcmp.le.s32.totalorder %v41, %v28
    %vm58 = vcmp.le.s32.totalorder %v42, %v28
    %vm59 = vcmp.le.s32.totalorder %v43, %v28
    %vm60 = vcmp.le.s32.totalorder %v44, %v28
    %vm61 = vcmp.le.s32.totalorder %v45, %v28
    %vm62 = vcmp.le.s32.totalorder %v46, %v28
    %vm63 = vcmp.le.s32.totalorder %v47, %v28
    %vm64 = vcmp.le.s32.totalorder %v48, %v28
    %vm65 = vcmp.le.s32.totalorder %v49, %v28
    %vm66 = vcmp.le.s32.totalorder %v50, %v28
    %vm67 = vcmp.le.s32.totalorder %v51, %v28
    %vm68 = vcmp.le.s32.totalorder %v52, %v28
    %v69 = vsel %vm53, 1.0, 0.0
    %v70 = vsel %vm54, 1.0, 0.0
    %v71 = vsel %vm55, 1.0, 0.0
    %v72 = vsel %vm56, 1.0, 0.0
    %v73 = vsel %vm57, 1.0, 0.0
    %v74 = vsel %vm58, 1.0, 0.0
    %v75 = vsel %vm59, 1.0, 0.0
    %v76 = vsel %vm60, 1.0, 0.0
    %v77 = vsel %vm61, 1.0, 0.0
    %v78 = vsel %vm62, 1.0, 0.0
    %v79 = vsel %vm63, 1.0, 0.0
    %v80 = vsel %vm64, 1.0, 0.0
    %v81 = vsel %vm65, 1.0, 0.0
    %v82 = vsel %vm66, 1.0, 0.0
    %v83 = vsel %vm67, 1.0, 0.0
    %v84 = vsel %vm68, 1.0, 0.0
    %v85 = vpack.c.bf16 %v70, %v69
    %v86 = vpack.c.bf16 %v72, %v71
    %v87 = vpack.c.bf16 %v74, %v73
    %v88 = vpack.c.bf16 %v76, %v75
    %v89 = vpack.c.bf16 %v78, %v77
    %v90 = vpack.c.bf16 %v80, %v79
    %v91 = vpack.c.bf16 %v82, %v81
    %v92 = vpack.c.bf16 %v84, %v83
    %v93 = vcvt.s32.f32 %v35
    %v94 = vpack.c.bf16 %v93, %v93
    %95 = vmatprep.subr.bf16.mxu0 0
    %96 = vmatpush1.bf16.msra.mxu0 %v92
    %97 = vmatprep.subr.bf16.mxu0 0
    %98 = vmatpush1.bf16.msra.mxu0 %v91
    %99 = vmatprep.subr.bf16.mxu0 0
    %100 = vmatpush1.bf16.msra.mxu0 %v90
    %101 = vmatprep.subr.bf16.mxu0 0
    %102 = vmatpush1.bf16.msra.mxu0 %v89
    %103 = vmatprep.subr.bf16.mxu0 0
    %104 = vmatpush1.bf16.msra.mxu0 %v88
    %105 = vmatprep.subr.bf16.mxu0 0
    %106 = vmatpush1.bf16.msra.mxu0 %v87
    %107 = vmatprep.subr.bf16.mxu0 0
    %108 = vmatpush1.bf16.msra.mxu0 %v86
    %109 = vmatprep.subr.bf16.mxu0 0
    %110 = vmatpush1.bf16.msra.mxu0 %v85
    %111 = vmatprep.subr.bf16.mxu0 0
    %112 = vmatpush2.bf16.msra.mxu0 0
    %113 = vmatprep.subr.bf16.mxu0 0
    %114 = vmatpush2.bf16.msra.mxu0 0
    %115 = vmatprep.subr.bf16.mxu0 0
    %116 = vmatpush2.bf16.msra.mxu0 0
    %117 = vmatprep.subr.bf16.mxu0 0
    %118 = vmatpush2.bf16.msra.mxu0 0
    %119 = vmatprep.subr.bf16.mxu0 0
    %120 = vmatpush2.bf16.msra.mxu0 0
    %121 = vmatprep.subr.bf16.mxu0 0
    %122 = vmatpush2.bf16.msra.mxu0 0
    %123 = vmatprep.subr.bf16.mxu0 0
    %124 = vmatpush2.bf16.msra.mxu0 0
    %125 = vmatprep.subr.bf16.mxu0 0
    %126 = vmatpush2.bf16.msra.mxu0 0
    %127 = vmatprep.mubr.bf16.mxu0 0
    %128 = vmatmul.mubr.bf16.gmra.mxu0 %v94
    %v129 = vpop.f32.mrf.mxu0
    %v130 = vadd.f32 0.0, %v129
    %v131 = vpop.f32.mrf.mxu0
    %v132 = vpop.f32.mrf.mxu0
    %v133 = vpop.f32.mrf.mxu0
    %134 = vdwg.mxu0
    %v135 = vcvt.f32.s32.to.zero.pseudo %v130
    %v136 = vsub.s32 %v135, 1
    %v137 = vsel %vm29, 4294967295, %v136
    %v138 = vpack.c.b16 %v137, %v137
    %v139 = vpack.c.b8 %v138, %v138
    %140 = vst [vmem:[#allocation5] sm:$0x3] %v139
    %141 = vset.pattern.permute.xlu0 127
    %142 = vperm.xlu0 %141, %v135
    %v143 = vpop.permute.xlu0 %142
    %v144 = vpack.c.b16 %v143, %v143
    %v145 = vpack.c.b8 %v144, %v144
    %146 = vst [vmem:[%s2] sm:$0x3] %v145
    // Predicated region
    $region10: #{tokenize_ids.1} parent=1 // pred_check
      _
    $region11: #{tokenize_ids.1} parent=1 // pred_check_branch
      %148 = sbr.rel (0) target = $region13
    $region12: #{tokenize_ids.1} parent=1 // pred_region
      %s150 = ssub.s32 32, 32
      %151 = vsyncadd [#allocation4], %s150
      %s153 = sshll.u32 [#allocation5], 4
      %s154 = int_to_ptr.vmem [resolvable:$true] %s153
      %156 = dma.vmem_to_hbm [thread:$0]  %s154, 32, %s1, [#allocation4]
    $region13: #{tokenize_ids.1} parent=1 // pred_fallthru
      _
    // Predicated region
    $region14: #{tokenize_ids.1} parent=1 // pred_check
      _
    $region15: #{tokenize_ids.1} parent=1 // pred_check_branch
      %158 = sbr.rel (0) target = $region17
    $region16: #{tokenize_ids.1} parent=1 // pred_region
      _
    $region17: #{tokenize_ids.1} parent=1 // pred_fallthru
      _
    // Predicated region
    $region18: #{tokenize_ids.1} parent=1 // pred_check
      _
    $region19: #{tokenize_ids.1} parent=1 // pred_check_branch
      %160 = sbr.rel (0) target = $region21
    $region20: #{tokenize_ids.1} parent=1 // pred_region
      %161 = dma.done [#allocation4], 32
    $region21: #{tokenize_ids.1} parent=1 // pred_fallthru
      _
    // Predicated region
    $region22: #{tokenize_ids.1} parent=1 // pred_check
      _
    $region23: #{tokenize_ids.1} parent=1 // pred_check_branch
      %163 = sbr.rel (0) target = $region25
    $region24: #{tokenize_ids.1} parent=1 // pred_region
      _
    $region25: #{tokenize_ids.1} parent=1 // pred_fallthru
      _
    %164 = vsyncpa [#allocation3], 1
    %165 = vsyncpa [#allocation4], 1

</llo_original>
